<compile_context>
chip_gen: v6e
topology: v6e:2x2x1
jax: 0.10.0
libtpu: 0.0.40
codegen_flags: <defaults>
</compile_context>

<pallas_src>
import jax
import jax.numpy as jnp
from jax import lax
from jax.experimental import pallas as pl
from jax.experimental.pallas import tpu as pltpu

_LANE = 128        # lane width of a vreg
_SUBLANE = 8       # sublanes per vreg -> 1024 cameras per grid step
_PALLAS_MIN_B = 1024  # below this, a single XLA fusion beats pallas_call overhead


# ---------------------------------------------------------------------------
# Kernels
# ---------------------------------------------------------------------------
def _rodrigues_terms(rt_ref):
    """Rodrigues exp-map terms; each returned value is a full (TS, 128) tile
    holding one scalar per camera.  rt rows: [rx ry rz tx ty tz]."""
    rx = rt_ref[0]
    ry = rt_ref[1]
    rz = rt_ref[2]
    tx = rt_ref[3]
    ty = rt_ref[4]
    tz = rt_ref[5]

    rx2 = rx * rx
    ry2 = ry * ry
    rz2 = rz * rz
    n2 = rx2 + ry2 + rz2
    inv = lax.rsqrt(n2 + 1e-30)              # 1/||r|| (guarded), single EUP op
    norm = n2 * inv                           # ||r|| via a VPU mul (no sqrt/div)
    a = jnp.sin(norm) * inv                   # sin(θ)/θ
    b = (1.0 - jnp.cos(norm)) * (inv * inv)   # (1 - cos(θ))/θ²

    # Hoisted products, reused across the R terms.
    a_rx = a * rx
    a_ry = a * ry
    a_rz = a * rz
    b_rxry = b * (rx * ry)
    b_rxrz = b * (rx * rz)
    b_ryrz = b * (ry * rz)

    one = jnp.ones_like(rx)
    R00 = one - b * (ry2 + rz2)
    R01 = b_rxry - a_rz
    R02 = b_rxrz + a_ry
    R10 = b_rxry + a_rz
    R11 = one - b * (rx2 + rz2)
    R12 = b_ryrz - a_rx
    R20 = b_rxrz - a_ry
    R21 = b_ryrz + a_rx
    R22 = one - b * (rx2 + ry2)
    return (R00, R01, R02, R10, R11, R12, R20, R21, R22), (tx, ty, tz)


def _learn_pose_kernel_with_init(rt_ref, init_ref, out_ref):
    """out = [R|t; 0 0 0 1] @ init.  init flattened row-major along the leading
    axis: init_ref[4*i + j] == init[i, j].  Static 4-way unroll; every op and
    store is a full (TS, 128) unmasked tile."""
    (R00, R01, R02, R10, R11, R12,
     R20, R21, R22), (tx, ty, tz) = _rodrigues_terms(rt_ref)
    for j in range(4):
        i0 = init_ref[j]           # init[0, j]
        i1 = init_ref[4 + j]       # init[1, j]
        i2 = init_ref[8 + j]       # init[2, j]
        i3 = init_ref[12 + j]      # init[3, j]
        out_ref[j]      = R00 * i0 + R01 * i1 + R02 * i2 + tx * i3
        out_ref[4 + j]  = R10 * i0 + R11 * i1 + R12 * i2 + ty * i3
        out_ref[8 + j]  = R20 * i0 + R21 * i1 + R22 * i2 + tz * i3
        out_ref[12 + j] = i3


def _learn_pose_kernel_no_init(rt_ref, out_ref):
    """Direct stores of the flattened [R|t; 0 0 0 1]; all full-tile vst."""
    (R00, R01, R02, R10, R11, R12,
     R20, R21, R22), (tx, ty, tz) = _rodrigues_terms(rt_ref)
    zero = jnp.zeros_like(tx)
    one = jnp.ones_like(tx)
    out_ref[0] = R00
    out_ref[1] = R01
    out_ref[2] = R02
    out_ref[3] = tx
    out_ref[4] = R10
    out_ref[5] = R11
    out_ref[6] = R12
    out_ref[7] = ty
    out_ref[8] = R20
    out_ref[9] = R21
    out_ref[10] = R22
    out_ref[11] = tz
    out_ref[12] = zero
    out_ref[13] = zero
    out_ref[14] = zero
    out_ref[15] = one


# ---------------------------------------------------------------------------
# Pure-JAX path (small batches / scalar cam_id)
# ---------------------------------------------------------------------------
def _forward_jax(cam_ids, r_param, t_param, init_c2w):
    """Vectorized XLA path; mirrors torch make_c2w (sqrt + 1e-15 guard)."""
    f32 = jnp.float32
    r = r_param[cam_ids].astype(f32)   # (B, 3)
    t = t_param[cam_ids].astype(f32)   # (B, 3)
    rx, ry, rz = r[:, 0], r[:, 1], r[:, 2]
    n = jnp.sqrt(rx * rx + ry * ry + rz * rz) + 1e-15
    a = jnp.sin(n) / n
    b = (1.0 - jnp.cos(n)) / (n * n)
    one = jnp.ones_like(rx)
    zero = jnp.zeros_like(rx)
    rows = [
        one - b * (ry * ry + rz * rz), -a * rz + b * rx * ry, a * ry + b * rx * rz, t[:, 0],
        a * rz + b * rx * ry, one - b * (rx * rx + rz * rz), -a * rx + b * ry * rz, t[:, 1],
        -a * ry + b * rx * rz, a * rx + b * ry * rz, one - b * (rx * rx + ry * ry), t[:, 2],
        zero, zero, zero, one,
    ]
    c2w = jnp.stack(rows, axis=-1).reshape(-1, 4, 4)
    if init_c2w is not None:
        c2w = c2w @ init_c2w[cam_ids].astype(f32)
    return c2w


# ---------------------------------------------------------------------------
# Public forward
# ---------------------------------------------------------------------------
def learn_pose_forward(cam_id, r_param, t_param, init_c2w=None, *, use_pallas=None):
    """LearnPose.forward.  cam_id: scalar int or int array (B,).
    Returns (4, 4) for a scalar cam_id (torch parity) or (B, 4, 4) otherwise."""
    cam_ids = jnp.asarray(cam_id, jnp.int32)
    scalar_input = cam_ids.ndim == 0
    cam_ids = jnp.atleast_1d(cam_ids)
    B = int(cam_ids.shape[0])

    if use_pallas is None:
        use_pallas = B > _PALLAS_MIN_B
    if not use_pallas:
        out = _forward_jax(cam_ids, r_param, t_param, init_c2w)
        return out[0] if scalar_input else out

    f32 = jnp.float32
    # 2-D camera tiling: cameras -> (Sp, 128) sublane/lane tiles, 8 sublanes
    # (1024 cameras) per grid step.
    S = pl.cdiv(B, _LANE)
    Sp = pl.cdiv(S, _SUBLANE) * _SUBLANE
    Bp = Sp * _LANE
    grid = (Sp // _SUBLANE,)

    # Gather along lanes of the (tiny) transposed parameter tables; avoids a
    # (B, k) -> (k, B) relayout of the big gathered arrays.
    rt_tbl = jnp.concatenate([r_param.T, t_param.T], axis=0).astype(f32)   # (6, num_cams)
    rt = jnp.pad(rt_tbl[:, cam_ids], ((0, 0), (0, Bp - B))).reshape(6, Sp, _LANE)

    compiler_params = pltpu.CompilerParams(dimension_semantics=("parallel",))

    if init_c2w is None:
        cost = pl.CostEstimate(flops=40 * B, transcendentals=3 * B,
                               bytes_accessed=(6 + 16) * 4 * B)
        out3 = pl.pallas_call(
            _learn_pose_kernel_no_init,
            out_shape=jax.ShapeDtypeStruct((16, Sp, _LANE), f32),
            grid=grid,
            in_specs=[pl.BlockSpec((6, _SUBLANE, _LANE), lambda i: (0, i, 0))],
            out_specs=pl.BlockSpec((16, _SUBLANE, _LANE), lambda i: (0, i, 0)),
            compiler_params=compiler_params,
            cost_estimate=cost,
        )(rt)
    else:
        init_tbl = init_c2w.reshape(init_c2w.shape[0], 16).T.astype(f32)   # (16, num_cams)
        init16 = jnp.pad(init_tbl[:, cam_ids],
                         ((0, 0), (0, Bp - B))).reshape(16, Sp, _LANE)
        cost = pl.CostEstimate(flops=90 * B, transcendentals=3 * B,
                               bytes_accessed=(6 + 16 + 16) * 4 * B)
        out3 = pl.pallas_call(
            _learn_pose_kernel_with_init,
            out_shape=jax.ShapeDtypeStruct((16, Sp, _LANE), f32),
            grid=grid,
            in_specs=[pl.BlockSpec((6, _SUBLANE, _LANE), lambda i: (0, i, 0)),
                      pl.BlockSpec((16, _SUBLANE, _LANE), lambda i: (0, i, 0))],
            out_specs=pl.BlockSpec((16, _SUBLANE, _LANE), lambda i: (0, i, 0)),
            compiler_params=compiler_params,
            cost_estimate=cost,
        )(rt, init16)

    # TODO(synk): consumers able to take the (16, B) lane-dense layout directly
    # should skip this transpose; it exists only for (B, 4, 4) torch-API parity.
    out = out3.reshape(16, Bp)[:, :B].T.reshape(B, 4, 4)
    return out[0] if scalar_input else out


# ---------------------------------------------------------------------------
# Reference (mirrors the torch make_c2w path exactly)
# ---------------------------------------------------------------------------
def _reference_forward(cam_ids, r_param, t_param, init_c2w):
    def one(cid):
        r = r_param[cid]
        t = t_param[cid]
        K = jnp.array([[0.0, -r[2], r[1]],
                       [r[2], 0.0, -r[0]],
                       [-r[1], r[0], 0.0]], jnp.float32)
        n = jnp.linalg.norm(r) + 1e-15
        R = (jnp.eye(3, dtype=jnp.float32)
             + (jnp.sin(n) / n) * K
             + ((1.0 - jnp.cos(n)) / (n * n)) * (K @ K))
        c2w = jnp.concatenate(
            [jnp.concatenate([R, t[:, None]], axis=1),
             jnp.array([[0.0, 0.0, 0.0, 1.0]], jnp.float32)], axis=0)
        return c2w @ init_c2w[cid]
    return jax.vmap(one)(cam_ids)


if __name__ == "__main__":
    num_cams = 4
    key = jax.random.PRNGKey(0)
    k_r, k_t, k_init, k_ids = jax.random.split(key, 4)

    # Parameter shapes from __init__: r (num_cams, 3), t (num_cams, 3),
    # init_c2w (num_cams, 4, 4).  Non-zero r so the Rodrigues path is exercised.
    r_param = 0.2 * jax.random.normal(k_r, (num_cams, 3), jnp.float32)
    t_param = 0.5 * jax.random.normal(k_t, (num_cams, 3), jnp.float32)
    init_c2w = jax.random.normal(k_init, (num_cams, 4, 4), jnp.float32)
    eye_init = jnp.broadcast_to(jnp.eye(4, dtype=jnp.float32), (num_cams, 4, 4))

    cam_ids_small = jnp.array([0, 2, 1, 3], dtype=jnp.int32)

    # 1) Pallas path (forced) at small B, with init_c2w.
    out = jax.block_until_ready(
        learn_pose_forward(cam_ids_small, r_param, t_param, init_c2w, use_pallas=True))
    ref = _reference_forward(cam_ids_small, r_param, t_param, init_c2w)
    assert out.shape == (4, 4, 4) and out.dtype == jnp.float32
    assert jnp.allclose(out, ref, atol=1e-5, rtol=1e-5), (
        f"max abs err {jnp.max(jnp.abs(out - ref))}")

    # 2) Pallas path (forced), init_c2w=None (module returns the bare c2w).
    out_no = jax.block_until_ready(
        learn_pose_forward(cam_ids_small, r_param, t_param, None, use_pallas=True))
    ref_no = _reference_forward(cam_ids_small, r_param, t_param, eye_init)
    assert out_no.shape == (4, 4, 4)
    assert jnp.allclose(out_no, ref_no, atol=1e-5, rtol=1e-5), (
        f"max abs err {jnp.max(jnp.abs(out_no - ref_no))}")

    # 3) Large batch: auto-dispatches to the Pallas path with a multi-step grid
    #    (B=1111 -> Sp=16 -> grid=(2,), padding/slicing exercised).
    cam_ids_big = jax.random.randint(k_ids, (1111,), 0, num_cams, jnp.int32)
    out_big = jax.block_until_ready(
        learn_pose_forward(cam_ids_big, r_param, t_param, init_c2w))
    ref_big = _reference_forward(cam_ids_big, r_param, t_param, init_c2w)
    assert out_big.shape == (1111, 4, 4)
    assert jnp.allclose(out_big, ref_big, atol=1e-5, rtol=1e-5), (
        f"max abs err {jnp.max(jnp.abs(out_big - ref_big))}")

    # 4) Small-batch auto path (pure-JAX fallback) matches too.
    out_fb = jax.block_until_ready(
        learn_pose_forward(cam_ids_small, r_param, t_param, init_c2w))
    assert jnp.allclose(out_fb, ref, atol=1e-5, rtol=1e-5), (
        f"max abs err {jnp.max(jnp.abs(out_fb - ref))}")

    # 5) Scalar cam_id returns (4, 4), matching the torch module API.
    out_one = jax.block_until_ready(
        learn_pose_forward(1, r_param, t_param, init_c2w))
    ref_one = _reference_forward(jnp.array([1], jnp.int32), r_param, t_param, init_c2w)[0]
    assert out_one.shape == (4, 4)
    assert jnp.allclose(out_one, ref_one, atol=1e-5, rtol=1e-5), (
        f"max abs err {jnp.max(jnp.abs(out_one - ref_one))}")

    print("KERNEL_OK")
</pallas_src>

<mosaic_0001>
module attributes {stable_mosaic.version = 11 : i64} {
  func.func @_learn_pose_kernel_with_init(%arg0: i32, %arg1: memref<6x8x128xf32, #tpu.memory_space<vmem>>, %arg2: memref<16x8x128xf32, #tpu.memory_space<vmem>>, %arg3: memref<16x8x128xf32, #tpu.memory_space<vmem>>) attributes {dimension_semantics = [#tpu.dimension_semantics<parallel>], iteration_bounds = array<i64: 1>, scalar_prefetch = 0 : i64, scratch_operands = 0 : i64, tpu.core_type = #tpu.core_type<tc>, window_params = [{transform_indices = @transform_0, window_bounds = array<i64: 6, 8, 128>}, {transform_indices = @transform_1, window_bounds = array<i64: 16, 8, 128>}, {transform_indices = @transform_2, window_bounds = array<i64: 16, 8, 128>}]} {
    %c0 = arith.constant 0 : index
    %c0_0 = arith.constant 0 : index
    %c0_1 = arith.constant 0 : index
    %0 = vector.load %arg1[%c0, %c0_0, %c0_1] : memref<6x8x128xf32, #tpu.memory_space<vmem>>, vector<1x8x128xf32>
    %1 = vector.shape_cast %0 : vector<1x8x128xf32> to vector<8x128xf32>
    %c1 = arith.constant 1 : index
    %c0_2 = arith.constant 0 : index
    %c0_3 = arith.constant 0 : index
    %2 = vector.load %arg1[%c1, %c0_2, %c0_3] : memref<6x8x128xf32, #tpu.memory_space<vmem>>, vector<1x8x128xf32>
    %3 = vector.shape_cast %2 : vector<1x8x128xf32> to vector<8x128xf32>
    %c2 = arith.constant 2 : index
    %c0_4 = arith.constant 0 : index
    %c0_5 = arith.constant 0 : index
    %4 = vector.load %arg1[%c2, %c0_4, %c0_5] : memref<6x8x128xf32, #tpu.memory_space<vmem>>, vector<1x8x128xf32>
    %5 = vector.shape_cast %4 : vector<1x8x128xf32> to vector<8x128xf32>
    %c3 = arith.constant 3 : index
    %c0_6 = arith.constant 0 : index
    %c0_7 = arith.constant 0 : index
    %6 = vector.load %arg1[%c3, %c0_6, %c0_7] : memref<6x8x128xf32, #tpu.memory_space<vmem>>, vector<1x8x128xf32>
    %7 = vector.shape_cast %6 : vector<1x8x128xf32> to vector<8x128xf32>
    %c4 = arith.constant 4 : index
    %c0_8 = arith.constant 0 : index
    %c0_9 = arith.constant 0 : index
    %8 = vector.load %arg1[%c4, %c0_8, %c0_9] : memref<6x8x128xf32, #tpu.memory_space<vmem>>, vector<1x8x128xf32>
    %9 = vector.shape_cast %8 : vector<1x8x128xf32> to vector<8x128xf32>
    %c5 = arith.constant 5 : index
    %c0_10 = arith.constant 0 : index
    %c0_11 = arith.constant 0 : index
    %10 = vector.load %arg1[%c5, %c0_10, %c0_11] : memref<6x8x128xf32, #tpu.memory_space<vmem>>, vector<1x8x128xf32>
    %11 = vector.shape_cast %10 : vector<1x8x128xf32> to vector<8x128xf32>
    %12 = arith.mulf %1, %1 : vector<8x128xf32>
    %13 = arith.mulf %3, %3 : vector<8x128xf32>
    %14 = arith.mulf %5, %5 : vector<8x128xf32>
    %15 = arith.addf %12, %13 : vector<8x128xf32>
    %16 = arith.addf %15, %14 : vector<8x128xf32>
    %cst = arith.constant 1.000000e-30 : f32
    %17 = vector.broadcast %cst : f32 to vector<8x128xf32>
    %18 = arith.addf %16, %17 : vector<8x128xf32>
    %19 = math.rsqrt %18 : vector<8x128xf32>
    %20 = arith.mulf %16, %19 : vector<8x128xf32>
    %21 = math.sin %20 : vector<8x128xf32>
    %22 = arith.mulf %21, %19 : vector<8x128xf32>
    %23 = math.cos %20 : vector<8x128xf32>
    %cst_12 = arith.constant 1.000000e+00 : f32
    %24 = vector.broadcast %cst_12 : f32 to vector<8x128xf32>
    %25 = arith.subf %24, %23 : vector<8x128xf32>
    %26 = arith.mulf %19, %19 : vector<8x128xf32>
    %27 = arith.mulf %25, %26 : vector<8x128xf32>
    %28 = arith.mulf %22, %1 : vector<8x128xf32>
    %29 = arith.mulf %22, %3 : vector<8x128xf32>
    %30 = arith.mulf %22, %5 : vector<8x128xf32>
    %31 = arith.mulf %1, %3 : vector<8x128xf32>
    %32 = arith.mulf %27, %31 : vector<8x128xf32>
    %33 = arith.mulf %1, %5 : vector<8x128xf32>
    %34 = arith.mulf %27, %33 : vector<8x128xf32>
    %35 = arith.mulf %3, %5 : vector<8x128xf32>
    %36 = arith.mulf %27, %35 : vector<8x128xf32>
    %cst_13 = arith.constant 1.000000e+00 : f32
    %37 = vector.broadcast %cst_13 : f32 to vector<8x128xf32>
    %38 = arith.addf %13, %14 : vector<8x128xf32>
    %39 = arith.mulf %27, %38 : vector<8x128xf32>
    %40 = arith.subf %37, %39 : vector<8x128xf32>
    %41 = arith.subf %32, %30 : vector<8x128xf32>
    %42 = arith.addf %34, %29 : vector<8x128xf32>
    %43 = arith.addf %32, %30 : vector<8x128xf32>
    %44 = arith.addf %12, %14 : vector<8x128xf32>
    %45 = arith.mulf %27, %44 : vector<8x128xf32>
    %46 = arith.subf %37, %45 : vector<8x128xf32>
    %47 = arith.subf %36, %28 : vector<8x128xf32>
    %48 = arith.subf %34, %29 : vector<8x128xf32>
    %49 = arith.addf %36, %28 : vector<8x128xf32>
    %50 = arith.addf %12, %13 : vector<8x128xf32>
    %51 = arith.mulf %27, %50 : vector<8x128xf32>
    %52 = arith.subf %37, %51 : vector<8x128xf32>
    %c0_14 = arith.constant 0 : index
    %c0_15 = arith.constant 0 : index
    %c0_16 = arith.constant 0 : index
    %53 = vector.load %arg2[%c0_14, %c0_15, %c0_16] : memref<16x8x128xf32, #tpu.memory_space<vmem>>, vector<1x8x128xf32>
    %54 = vector.shape_cast %53 : vector<1x8x128xf32> to vector<8x128xf32>
    %c4_17 = arith.constant 4 : index
    %c0_18 = arith.constant 0 : index
    %c0_19 = arith.constant 0 : index
    %55 = vector.load %arg2[%c4_17, %c0_18, %c0_19] : memref<16x8x128xf32, #tpu.memory_space<vmem>>, vector<1x8x128xf32>
    %56 = vector.shape_cast %55 : vector<1x8x128xf32> to vector<8x128xf32>
    %c8 = arith.constant 8 : index
    %c0_20 = arith.constant 0 : index
    %c0_21 = arith.constant 0 : index
    %57 = vector.load %arg2[%c8, %c0_20, %c0_21] : memref<16x8x128xf32, #tpu.memory_space<vmem>>, vector<1x8x128xf32>
    %58 = vector.shape_cast %57 : vector<1x8x128xf32> to vector<8x128xf32>
    %c12 = arith.constant 12 : index
    %c0_22 = arith.constant 0 : index
    %c0_23 = arith.constant 0 : index
    %59 = vector.load %arg2[%c12, %c0_22, %c0_23] : memref<16x8x128xf32, #tpu.memory_space<vmem>>, vector<1x8x128xf32>
    %60 = vector.shape_cast %59 : vector<1x8x128xf32> to vector<8x128xf32>
    %61 = arith.mulf %40, %54 : vector<8x128xf32>
    %62 = arith.mulf %41, %56 : vector<8x128xf32>
    %63 = arith.addf %61, %62 : vector<8x128xf32>
    %64 = arith.mulf %42, %58 : vector<8x128xf32>
    %65 = arith.addf %63, %64 : vector<8x128xf32>
    %66 = arith.mulf %7, %60 : vector<8x128xf32>
    %67 = arith.addf %65, %66 : vector<8x128xf32>
    %c0_24 = arith.constant 0 : index
    %c0_25 = arith.constant 0 : index
    %c0_26 = arith.constant 0 : index
    %68 = vector.load %arg3[%c0_24, %c0_25, %c0_26] : memref<16x8x128xf32, #tpu.memory_space<vmem>>, vector<1x8x128xf32>
    %69 = vector.shape_cast %68 : vector<1x8x128xf32> to vector<8x128xf32>
    %70 = vector.shape_cast %67 : vector<8x128xf32> to vector<1x8x128xf32>
    tpu.vector_store %arg3[%c0_24, %c0_25, %c0_26], %70 {strides = array<i32>} : memref<16x8x128xf32, #tpu.memory_space<vmem>>, vector<1x8x128xf32>,
    %71 = arith.mulf %43, %54 : vector<8x128xf32>
    %72 = arith.mulf %46, %56 : vector<8x128xf32>
    %73 = arith.addf %71, %72 : vector<8x128xf32>
    %74 = arith.mulf %47, %58 : vector<8x128xf32>
    %75 = arith.addf %73, %74 : vector<8x128xf32>
    %76 = arith.mulf %9, %60 : vector<8x128xf32>
    %77 = arith.addf %75, %76 : vector<8x128xf32>
    %c4_27 = arith.constant 4 : index
    %c0_28 = arith.constant 0 : index
    %c0_29 = arith.constant 0 : index
    %78 = vector.load %arg3[%c4_27, %c0_28, %c0_29] : memref<16x8x128xf32, #tpu.memory_space<vmem>>, vector<1x8x128xf32>
    %79 = vector.shape_cast %78 : vector<1x8x128xf32> to vector<8x128xf32>
    %80 = vector.shape_cast %77 : vector<8x128xf32> to vector<1x8x128xf32>
    tpu.vector_store %arg3[%c4_27, %c0_28, %c0_29], %80 {strides = array<i32>} : memref<16x8x128xf32, #tpu.memory_space<vmem>>, vector<1x8x128xf32>,
    %81 = arith.mulf %48, %54 : vector<8x128xf32>
    %82 = arith.mulf %49, %56 : vector<8x128xf32>
    %83 = arith.addf %81, %82 : vector<8x128xf32>
    %84 = arith.mulf %52, %58 : vector<8x128xf32>
    %85 = arith.addf %83, %84 : vector<8x128xf32>
    %86 = arith.mulf %11, %60 : vector<8x128xf32>
    %87 = arith.addf %85, %86 : vector<8x128xf32>
    %c8_30 = arith.constant 8 : index
    %c0_31 = arith.constant 0 : index
    %c0_32 = arith.constant 0 : index
    %88 = vector.load %arg3[%c8_30, %c0_31, %c0_32] : memref<16x8x128xf32, #tpu.memory_space<vmem>>, vector<1x8x128xf32>
    %89 = vector.shape_cast %88 : vector<1x8x128xf32> to vector<8x128xf32>
    %90 = vector.shape_cast %87 : vector<8x128xf32> to vector<1x8x128xf32>
    tpu.vector_store %arg3[%c8_30, %c0_31, %c0_32], %90 {strides = array<i32>} : memref<16x8x128xf32, #tpu.memory_space<vmem>>, vector<1x8x128xf32>,
    %c12_33 = arith.constant 12 : index
    %c0_34 = arith.constant 0 : index
    %c0_35 = arith.constant 0 : index
    %91 = vector.load %arg3[%c12_33, %c0_34, %c0_35] : memref<16x8x128xf32, #tpu.memory_space<vmem>>, vector<1x8x128xf32>
    %92 = vector.shape_cast %91 : vector<1x8x128xf32> to vector<8x128xf32>
    %93 = vector.shape_cast %60 : vector<8x128xf32> to vector<1x8x128xf32>
    tpu.vector_store %arg3[%c12_33, %c0_34, %c0_35], %93 {strides = array<i32>} : memref<16x8x128xf32, #tpu.memory_space<vmem>>, vector<1x8x128xf32>,
    %c1_36 = arith.constant 1 : index
    %c0_37 = arith.constant 0 : index
    %c0_38 = arith.constant 0 : index
    %94 = vector.load %arg2[%c1_36, %c0_37, %c0_38] : memref<16x8x128xf32, #tpu.memory_space<vmem>>, vector<1x8x128xf32>
    %95 = vector.shape_cast %94 : vector<1x8x128xf32> to vector<8x128xf32>
    %c5_39 = arith.constant 5 : index
    %c0_40 = arith.constant 0 : index
    %c0_41 = arith.constant 0 : index
    %96 = vector.load %arg2[%c5_39, %c0_40, %c0_41] : memref<16x8x128xf32, #tpu.memory_space<vmem>>, vector<1x8x128xf32>
    %97 = vector.shape_cast %96 : vector<1x8x128xf32> to vector<8x128xf32>
    %c9 = arith.constant 9 : index
    %c0_42 = arith.constant 0 : index
    %c0_43 = arith.constant 0 : index
    %98 = vector.load %arg2[%c9, %c0_42, %c0_43] : memref<16x8x128xf32, #tpu.memory_space<vmem>>, vector<1x8x128xf32>
    %99 = vector.shape_cast %98 : vector<1x8x128xf32> to vector<8x128xf32>
    %c13 = arith.constant 13 : index
    %c0_44 = arith.constant 0 : index
    %c0_45 = arith.constant 0 : index
    %100 = vector.load %arg2[%c13, %c0_44, %c0_45] : memref<16x8x128xf32, #tpu.memory_space<vmem>>, vector<1x8x128xf32>
    %101 = vector.shape_cast %100 : vector<1x8x128xf32> to vector<8x128xf32>
    %102 = arith.mulf %40, %95 : vector<8x128xf32>
    %103 = arith.mulf %41, %97 : vector<8x128xf32>
    %104 = arith.addf %102, %103 : vector<8x128xf32>
    %105 = arith.mulf %42, %99 : vector<8x128xf32>
    %106 = arith.addf %104, %105 : vector<8x128xf32>
    %107 = arith.mulf %7, %101 : vector<8x128xf32>
    %108 = arith.addf %106, %107 : vector<8x128xf32>
    %c1_46 = arith.constant 1 : index
    %c0_47 = arith.constant 0 : index
    %c0_48 = arith.constant 0 : index
    %109 = vector.load %arg3[%c1_46, %c0_47, %c0_48] : memref<16x8x128xf32, #tpu.memory_space<vmem>>, vector<1x8x128xf32>
    %110 = vector.shape_cast %109 : vector<1x8x128xf32> to vector<8x128xf32>
    %111 = vector.shape_cast %108 : vector<8x128xf32> to vector<1x8x128xf32>
    tpu.vector_store %arg3[%c1_46, %c0_47, %c0_48], %111 {strides = array<i32>} : memref<16x8x128xf32, #tpu.memory_space<vmem>>, vector<1x8x128xf32>,
    %112 = arith.mulf %43, %95 : vector<8x128xf32>
    %113 = arith.mulf %46, %97 : vector<8x128xf32>
    %114 = arith.addf %112, %113 : vector<8x128xf32>
    %115 = arith.mulf %47, %99 : vector<8x128xf32>
    %116 = arith.addf %114, %115 : vector<8x128xf32>
    %117 = arith.mulf %9, %101 : vector<8x128xf32>
    %118 = arith.addf %116, %117 : vector<8x128xf32>
    %c5_49 = arith.constant 5 : index
    %c0_50 = arith.constant 0 : index
    %c0_51 = arith.constant 0 : index
    %119 = vector.load %arg3[%c5_49, %c0_50, %c0_51] : memref<16x8x128xf32, #tpu.memory_space<vmem>>, vector<1x8x128xf32>
    %120 = vector.shape_cast %119 : vector<1x8x128xf32> to vector<8x128xf32>
    %121 = vector.shape_cast %118 : vector<8x128xf32> to vector<1x8x128xf32>
    tpu.vector_store %arg3[%c5_49, %c0_50, %c0_51], %121 {strides = array<i32>} : memref<16x8x128xf32, #tpu.memory_space<vmem>>, vector<1x8x128xf32>,
    %122 = arith.mulf %48, %95 : vector<8x128xf32>
    %123 = arith.mulf %49, %97 : vector<8x128xf32>
    %124 = arith.addf %122, %123 : vector<8x128xf32>
    %125 = arith.mulf %52, %99 : vector<8x128xf32>
    %126 = arith.addf %124, %125 : vector<8x128xf32>
    %127 = arith.mulf %11, %101 : vector<8x128xf32>
    %128 = arith.addf %126, %127 : vector<8x128xf32>
    %c9_52 = arith.constant 9 : index
    %c0_53 = arith.constant 0 : index
    %c0_54 = arith.constant 0 : index
    %129 = vector.load %arg3[%c9_52, %c0_53, %c0_54] : memref<16x8x128xf32, #tpu.memory_space<vmem>>, vector<1x8x128xf32>
    %130 = vector.shape_cast %129 : vector<1x8x128xf32> to vector<8x128xf32>
    %131 = vector.shape_cast %128 : vector<8x128xf32> to vector<1x8x128xf32>
    tpu.vector_store %arg3[%c9_52, %c0_53, %c0_54], %131 {strides = array<i32>} : memref<16x8x128xf32, #tpu.memory_space<vmem>>, vector<1x8x128xf32>,
    %c13_55 = arith.constant 13 : index
    %c0_56 = arith.constant 0 : index
    %c0_57 = arith.constant 0 : index
    %132 = vector.load %arg3[%c13_55, %c0_56, %c0_57] : memref<16x8x128xf32, #tpu.memory_space<vmem>>, vector<1x8x128xf32>
    %133 = vector.shape_cast %132 : vector<1x8x128xf32> to vector<8x128xf32>
    %134 = vector.shape_cast %101 : vector<8x128xf32> to vector<1x8x128xf32>
    tpu.vector_store %arg3[%c13_55, %c0_56, %c0_57], %134 {strides = array<i32>} : memref<16x8x128xf32, #tpu.memory_space<vmem>>, vector<1x8x128xf32>,
    %c2_58 = arith.constant 2 : index
    %c0_59 = arith.constant 0 : index
    %c0_60 = arith.constant 0 : index
    %135 = vector.load %arg2[%c2_58, %c0_59, %c0_60] : memref<16x8x128xf32, #tpu.memory_space<vmem>>, vector<1x8x128xf32>
    %136 = vector.shape_cast %135 : vector<1x8x128xf32> to vector<8x128xf32>
    %c6 = arith.constant 6 : index
    %c0_61 = arith.constant 0 : index
    %c0_62 = arith.constant 0 : index
    %137 = vector.load %arg2[%c6, %c0_61, %c0_62] : memref<16x8x128xf32, #tpu.memory_space<vmem>>, vector<1x8x128xf32>
    %138 = vector.shape_cast %137 : vector<1x8x128xf32> to vector<8x128xf32>
    %c10 = arith.constant 10 : index
    %c0_63 = arith.constant 0 : index
    %c0_64 = arith.constant 0 : index
    %139 = vector.load %arg2[%c10, %c0_63, %c0_64] : memref<16x8x128xf32, #tpu.memory_space<vmem>>, vector<1x8x128xf32>
    %140 = vector.shape_cast %139 : vector<1x8x128xf32> to vector<8x128xf32>
    %c14 = arith.constant 14 : index
    %c0_65 = arith.constant 0 : index
    %c0_66 = arith.constant 0 : index
    %141 = vector.load %arg2[%c14, %c0_65, %c0_66] : memref<16x8x128xf32, #tpu.memory_space<vmem>>, vector<1x8x128xf32>
    %142 = vector.shape_cast %141 : vector<1x8x128xf32> to vector<8x128xf32>
    %143 = arith.mulf %40, %136 : vector<8x128xf32>
    %144 = arith.mulf %41, %138 : vector<8x128xf32>
    %145 = arith.addf %143, %144 : vector<8x128xf32>
    %146 = arith.mulf %42, %140 : vector<8x128xf32>
    %147 = arith.addf %145, %146 : vector<8x128xf32>
    %148 = arith.mulf %7, %142 : vector<8x128xf32>
    %149 = arith.addf %147, %148 : vector<8x128xf32>
    %c2_67 = arith.constant 2 : index
    %c0_68 = arith.constant 0 : index
    %c0_69 = arith.constant 0 : index
    %150 = vector.load %arg3[%c2_67, %c0_68, %c0_69] : memref<16x8x128xf32, #tpu.memory_space<vmem>>, vector<1x8x128xf32>
    %151 = vector.shape_cast %150 : vector<1x8x128xf32> to vector<8x128xf32>
    %152 = vector.shape_cast %149 : vector<8x128xf32> to vector<1x8x128xf32>
    tpu.vector_store %arg3[%c2_67, %c0_68, %c0_69], %152 {strides = array<i32>} : memref<16x8x128xf32, #tpu.memory_space<vmem>>, vector<1x8x128xf32>,
    %153 = arith.mulf %43, %136 : vector<8x128xf32>
    %154 = arith.mulf %46, %138 : vector<8x128xf32>
    %155 = arith.addf %153, %154 : vector<8x128xf32>
    %156 = arith.mulf %47, %140 : vector<8x128xf32>
    %157 = arith.addf %155, %156 : vector<8x128xf32>
    %158 = arith.mulf %9, %142 : vector<8x128xf32>
    %159 = arith.addf %157, %158 : vector<8x128xf32>
    %c6_70 = arith.constant 6 : index
    %c0_71 = arith.constant 0 : index
    %c0_72 = arith.constant 0 : index
    %160 = vector.load %arg3[%c6_70, %c0_71, %c0_72] : memref<16x8x128xf32, #tpu.memory_space<vmem>>, vector<1x8x128xf32>
    %161 = vector.shape_cast %160 : vector<1x8x128xf32> to vector<8x128xf32>
    %162 = vector.shape_cast %159 : vector<8x128xf32> to vector<1x8x128xf32>
    tpu.vector_store %arg3[%c6_70, %c0_71, %c0_72], %162 {strides = array<i32>} : memref<16x8x128xf32, #tpu.memory_space<vmem>>, vector<1x8x128xf32>,
    %163 = arith.mulf %48, %136 : vector<8x128xf32>
    %164 = arith.mulf %49, %138 : vector<8x128xf32>
    %165 = arith.addf %163, %164 : vector<8x128xf32>
    %166 = arith.mulf %52, %140 : vector<8x128xf32>
    %167 = arith.addf %165, %166 : vector<8x128xf32>
    %168 = arith.mulf %11, %142 : vector<8x128xf32>
    %169 = arith.addf %167, %168 : vector<8x128xf32>
    %c10_73 = arith.constant 10 : index
    %c0_74 = arith.constant 0 : index
    %c0_75 = arith.constant 0 : index
    %170 = vector.load %arg3[%c10_73, %c0_74, %c0_75] : memref<16x8x128xf32, #tpu.memory_space<vmem>>, vector<1x8x128xf32>
    %171 = vector.shape_cast %170 : vector<1x8x128xf32> to vector<8x128xf32>
    %172 = vector.shape_cast %169 : vector<8x128xf32> to vector<1x8x128xf32>
    tpu.vector_store %arg3[%c10_73, %c0_74, %c0_75], %172 {strides = array<i32>} : memref<16x8x128xf32, #tpu.memory_space<vmem>>, vector<1x8x128xf32>,
    %c14_76 = arith.constant 14 : index
    %c0_77 = arith.constant 0 : index
    %c0_78 = arith.constant 0 : index
    %173 = vector.load %arg3[%c14_76, %c0_77, %c0_78] : memref<16x8x128xf32, #tpu.memory_space<vmem>>, vector<1x8x128xf32>
    %174 = vector.shape_cast %173 : vector<1x8x128xf32> to vector<8x128xf32>
    %175 = vector.shape_cast %142 : vector<8x128xf32> to vector<1x8x128xf32>
    tpu.vector_store %arg3[%c14_76, %c0_77, %c0_78], %175 {strides = array<i32>} : memref<16x8x128xf32, #tpu.memory_space<vmem>>, vector<1x8x128xf32>,
    %c3_79 = arith.constant 3 : index
    %c0_80 = arith.constant 0 : index
    %c0_81 = arith.constant 0 : index
    %176 = vector.load %arg2[%c3_79, %c0_80, %c0_81] : memref<16x8x128xf32, #tpu.memory_space<vmem>>, vector<1x8x128xf32>
    %177 = vector.shape_cast %176 : vector<1x8x128xf32> to vector<8x128xf32>
    %c7 = arith.constant 7 : index
    %c0_82 = arith.constant 0 : index
    %c0_83 = arith.constant 0 : index
    %178 = vector.load %arg2[%c7, %c0_82, %c0_83] : memref<16x8x128xf32, #tpu.memory_space<vmem>>, vector<1x8x128xf32>
    %179 = vector.shape_cast %178 : vector<1x8x128xf32> to vector<8x128xf32>
    %c11 = arith.constant 11 : index
    %c0_84 = arith.constant 0 : index
    %c0_85 = arith.constant 0 : index
    %180 = vector.load %arg2[%c11, %c0_84, %c0_85] : memref<16x8x128xf32, #tpu.memory_space<vmem>>, vector<1x8x128xf32>
    %181 = vector.shape_cast %180 : vector<1x8x128xf32> to vector<8x128xf32>
    %c15 = arith.constant 15 : index
    %c0_86 = arith.constant 0 : index
    %c0_87 = arith.constant 0 : index
    %182 = vector.load %arg2[%c15, %c0_86, %c0_87] : memref<16x8x128xf32, #tpu.memory_space<vmem>>, vector<1x8x128xf32>
    %183 = vector.shape_cast %182 : vector<1x8x128xf32> to vector<8x128xf32>
    %184 = arith.mulf %40, %177 : vector<8x128xf32>
    %185 = arith.mulf %41, %179 : vector<8x128xf32>
    %186 = arith.addf %184, %185 : vector<8x128xf32>
    %187 = arith.mulf %42, %181 : vector<8x128xf32>
    %188 = arith.addf %186, %187 : vector<8x128xf32>
    %189 = arith.mulf %7, %183 : vector<8x128xf32>
    %190 = arith.addf %188, %189 : vector<8x128xf32>
    %c3_88 = arith.constant 3 : index
    %c0_89 = arith.constant 0 : index
    %c0_90 = arith.constant 0 : index
    %191 = vector.load %arg3[%c3_88, %c0_89, %c0_90] : memref<16x8x128xf32, #tpu.memory_space<vmem>>, vector<1x8x128xf32>
    %192 = vector.shape_cast %191 : vector<1x8x128xf32> to vector<8x128xf32>
    %193 = vector.shape_cast %190 : vector<8x128xf32> to vector<1x8x128xf32>
    tpu.vector_store %arg3[%c3_88, %c0_89, %c0_90], %193 {strides = array<i32>} : memref<16x8x128xf32, #tpu.memory_space<vmem>>, vector<1x8x128xf32>,
    %194 = arith.mulf %43, %177 : vector<8x128xf32>
    %195 = arith.mulf %46, %179 : vector<8x128xf32>
    %196 = arith.addf %194, %195 : vector<8x128xf32>
    %197 = arith.mulf %47, %181 : vector<8x128xf32>
    %198 = arith.addf %196, %197 : vector<8x128xf32>
    %199 = arith.mulf %9, %183 : vector<8x128xf32>
    %200 = arith.addf %198, %199 : vector<8x128xf32>
    %c7_91 = arith.constant 7 : index
    %c0_92 = arith.constant 0 : index
    %c0_93 = arith.constant 0 : index
    %201 = vector.load %arg3[%c7_91, %c0_92, %c0_93] : memref<16x8x128xf32, #tpu.memory_space<vmem>>, vector<1x8x128xf32>
    %202 = vector.shape_cast %201 : vector<1x8x128xf32> to vector<8x128xf32>
    %203 = vector.shape_cast %200 : vector<8x128xf32> to vector<1x8x128xf32>
    tpu.vector_store %arg3[%c7_91, %c0_92, %c0_93], %203 {strides = array<i32>} : memref<16x8x128xf32, #tpu.memory_space<vmem>>, vector<1x8x128xf32>,
    %204 = arith.mulf %48, %177 : vector<8x128xf32>
    %205 = arith.mulf %49, %179 : vector<8x128xf32>
    %206 = arith.addf %204, %205 : vector<8x128xf32>
    %207 = arith.mulf %52, %181 : vector<8x128xf32>
    %208 = arith.addf %206, %207 : vector<8x128xf32>
    %209 = arith.mulf %11, %183 : vector<8x128xf32>
    %210 = arith.addf %208, %209 : vector<8x128xf32>
    %c11_94 = arith.constant 11 : index
    %c0_95 = arith.constant 0 : index
    %c0_96 = arith.constant 0 : index
    %211 = vector.load %arg3[%c11_94, %c0_95, %c0_96] : memref<16x8x128xf32, #tpu.memory_space<vmem>>, vector<1x8x128xf32>
    %212 = vector.shape_cast %211 : vector<1x8x128xf32> to vector<8x128xf32>
    %213 = vector.shape_cast %210 : vector<8x128xf32> to vector<1x8x128xf32>
    tpu.vector_store %arg3[%c11_94, %c0_95, %c0_96], %213 {strides = array<i32>} : memref<16x8x128xf32, #tpu.memory_space<vmem>>, vector<1x8x128xf32>,
    %c15_97 = arith.constant 15 : index
    %c0_98 = arith.constant 0 : index
    %c0_99 = arith.constant 0 : index
    %214 = vector.load %arg3[%c15_97, %c0_98, %c0_99] : memref<16x8x128xf32, #tpu.memory_space<vmem>>, vector<1x8x128xf32>
    %215 = vector.shape_cast %214 : vector<1x8x128xf32> to vector<8x128xf32>
    %216 = vector.shape_cast %183 : vector<8x128xf32> to vector<1x8x128xf32>
    tpu.vector_store %arg3[%c15_97, %c0_98, %c0_99], %216 {strides = array<i32>} : memref<16x8x128xf32, #tpu.memory_space<vmem>>, vector<1x8x128xf32>,
    return
  }
  func.func @transform_0(%arg0: i32) -> (i32, i32, i32) {
    %c0_i32 = arith.constant 0 : i32
    %c0_i32_0 = arith.constant 0 : i32
    %c0_i32_1 = arith.constant 0 : i32
    return %c0_i32, %arg0, %c0_i32_0 : i32, i32, i32
  }
  func.func @transform_1(%arg0: i32) -> (i32, i32, i32) {
    %c0_i32 = arith.constant 0 : i32
    %c0_i32_0 = arith.constant 0 : i32
    %c0_i32_1 = arith.constant 0 : i32
    return %c0_i32, %arg0, %c0_i32_0 : i32, i32, i32
  }
  func.func @transform_2(%arg0: i32) -> (i32, i32, i32) {
    %c0_i32 = arith.constant 0 : i32
    %c0_i32_0 = arith.constant 0 : i32
    %c0_i32_1 = arith.constant 0 : i32
    return %c0_i32, %arg0, %c0_i32_0 : i32, i32, i32
  }
}

</mosaic_0001>

<llo_original>
// kernel: tpu_custom_call.1
$region0: #{tpu_custom_call.1}
  #allocation0 [shape = 'u32[]', space=smem, size = 0x4, offset = 0x4, fixed_abs, tag = 'smem constant byte address 0x4 - core index']
  #allocation1 [shape = 'u32[144,128]{1,0:T(1,128)}', space=vmem, size = 0x12000, scoped, tag = 'internal scratch']
  %s0 = inlined_call_operand.hbm [shape: f32[6,8,128], index: 0, kind: input, shape index: {}]
  %s1 = inlined_call_operand.hbm [shape: f32[16,8,128], index: 1, kind: input, shape index: {}]
  %s2 = inlined_call_operand.hbm [shape: f32[16,8,128], index: 2, kind: output, shape index: {}]
  %s3 = sld [smem:[#allocation0]]
  $region26: #{tpu_custom_call.1} parent=0
    _
  %s5 = ssub.s32 1, %s3
  %s6 = scalar_select 0, %s5, %s3
  $region1: #{tpu_custom_call.1} parent=0
    #allocation2 [shape = 'u8[24576]{0}', space=vmem, size = 0x6000, scoped, tag = 'input window, operand 0, single buffered']
    #allocation3 [shape = 's32[1]{0}', space=sflag, size = 0x4, scoped, tag = 'scoped memory for tpu_custom_call.1']
    #allocation4 [shape = 's32[1]{0}', space=sflag, size = 0x4, scoped, tag = 'scoped memory for tpu_custom_call.1']
    #allocation5 [shape = 'u8[65536]{0}', space=vmem, size = 0x10000, scoped, tag = 'input window, operand 1, single buffered']
    #allocation6 [shape = 's32[1]{0}', space=sflag, size = 0x4, scoped, tag = 'scoped memory for tpu_custom_call.1']
    #allocation7 [shape = 'u8[65536]{0}', space=vmem, size = 0x10000, scoped, tag = 'output window, operand 0, single buffered']
    %7 = vsyncpa [#allocation3], 0
    %8 = vsyncpa [#allocation6], 0
    %9 = vsyncpa [#allocation4], 0
    // Predicated region
    $region2: #{tpu_custom_call.1} parent=1 // pred_check
      _
    $region3: #{tpu_custom_call.1} parent=1 // pred_check_branch
      %11 = sbr.rel (0) target = $region5
    $region4: #{tpu_custom_call.1} parent=1 // pred_region
      %s13 = ssub.s32 768, 768
      %14 = vsyncadd [#allocation3], %s13
      %s15 = sshll.u32 [#allocation2], 4
      %s16 = int_to_ptr.vmem [resolvable:$true] %s15
      %21 = dma.hbm_to_vmem [thread:$0]  %s0, 768, %s16, [#allocation3], 128, 128, 8
    $region5: #{tpu_custom_call.1} parent=1 // pred_fallthru
      _
    // Predicated region
    $region6: #{tpu_custom_call.1} parent=1 // pred_check
      _
    $region7: #{tpu_custom_call.1} parent=1 // pred_check_branch
      %23 = sbr.rel (0) target = $region9
    $region8: #{tpu_custom_call.1} parent=1 // pred_region
      %s25 = ssub.s32 2048, 2048
      %26 = vsyncadd [#allocation6], %s25
      %s27 = sshll.u32 [#allocation5], 4
      %s28 = int_to_ptr.vmem [resolvable:$true] %s27
      %33 = dma.hbm_to_vmem [thread:$0]  %s1, 2048, %s28, [#allocation6], 128, 128, 8
    $region9: #{tpu_custom_call.1} parent=1 // pred_fallthru
      _
    // Predicated region
    $region10: #{tpu_custom_call.1} parent=1 // pred_check
      _
    $region11: #{tpu_custom_call.1} parent=1 // pred_check_branch
      %35 = sbr.rel (0) target = $region13
    $region12: #{tpu_custom_call.1} parent=1 // pred_region
      %36 = dma.done [#allocation3], 768
    $region13: #{tpu_custom_call.1} parent=1 // pred_fallthru
      _
    // Predicated region
    $region14: #{tpu_custom_call.1} parent=1 // pred_check
      _
    $region15: #{tpu_custom_call.1} parent=1 // pred_check_branch
      %38 = sbr.rel (0) target = $region17
    $region16: #{tpu_custom_call.1} parent=1 // pred_region
      %39 = dma.done [#allocation6], 2048
    $region17: #{tpu_custom_call.1} parent=1 // pred_fallthru
      _
    %v40 = vld [vmem:[#allocation2] sm:$0xff]
    %s41 = scalar_lea.vmem [#allocation2], 8
    %v42 = vld [vmem:[%s41] sm:$0xff]
    %s43 = scalar_lea.vmem [#allocation2], 16
    %v44 = vld [vmem:[%s43] sm:$0xff]
    %s45 = scalar_lea.vmem [#allocation2], 24
    %v46 = vld [vmem:[%s45] sm:$0xff]
    %s47 = scalar_lea.vmem [#allocation2], 32
    %v48 = vld [vmem:[%s47] sm:$0xff]
    %s49 = scalar_lea.vmem [#allocation2], 40
    %v50 = vld [vmem:[%s49] sm:$0xff]
    %v51 = vmul.f32 %v40, %v40
    %v52 = vmul.f32 %v42, %v42
    %v53 = vmul.f32 %v44, %v44
    %v54 = vadd.f32 %v51, %v52
    %v55 = vadd.f32 %v54, %v53
    %v56 = vadd.f32 %v55, 1e-30
    %v57 = vrsqrt.pop %v56
    %v58 = vmul.f32 %v55, %v57
    %v59 = vand.u32 2147483647, %v58
    %vm60 = vcmp.le.f32.partialorder %v59, 0.7853982
    %vm61 = vcmp.lt.s32.totalorder %v58, 0
    %v62 = vand.u32 %v58, 2139095040
    %v63 = vshrl.u32 %v62, 23
    %v64 = vsub.s32 %v63, 127
    %v65 = vand.u32 2147483647, %v58
    %v66 = vand.u32 %v65, 8388607
    %v67 = vor.u32 %v66, 8388608
    %v68 = vsub.s32 0, %v67
    %v69 = vadd.s32 %v64, 1
    %vm70 = vcmp.gt.s32.totalorder %v69, 0
    %v71 = vsel %vm70, %v69, 0
    %v72 = vshrl.u32 %v71, 5
    %v73 = vand.u32 %v71, 31
    %v74 = vsub.s32 32, %v73
    %v75 = vshrl.u32 683565275, %v74
    %v76 = vshll.u32 683565275, %v73
    %v77 = vshrl.u32 2475754826, %v74
    %v78 = vor.u32 %v76, %v77
    %v79 = vshll.u32 2475754826, %v73
    %v80 = vshrl.u32 2131351028, %v74
    %v81 = vor.u32 %v79, %v80
    %v82 = vshll.u32 2131351028, %v73
    %v83 = vshrl.u32 2102212464, %v74
    %v84 = vor.u32 %v82, %v83
    %v85 = vshll.u32 2102212464, %v73
    %v86 = vshrl.u32 920167782, %v74
    %v87 = vor.u32 %v85, %v86
    %v88 = vshll.u32 920167782, %v73
    %v89 = vshrl.u32 1326507024, %v74
    %v90 = vor.u32 %v88, %v89
    %vm91 = vcmp.lt.s32.totalorder %v72, 1
    %vm92 = vcmp.lt.s32.totalorder %v72, 2
    %vm93 = vcmp.lt.s32.totalorder %v72, 3
    %vm94 = vcmp.lt.s32.totalorder %v72, 4
    %v95 = vsel %vm91, %v75, %v78
    %v96 = vsel %vm94, %v84, 2102212464
    %v97 = vsel %vm93, %v81, %v96
    %v98 = vsel %vm92, %v95, %v97
    %v99 = vsel %vm91, %v78, %v81
    %v100 = vsel %vm94, %v87, 920167782
    %v101 = vsel %vm93, %v84, %v100
    %v102 = vsel %vm92, %v99, %v101
    %v103 = vsel %vm91, %v81, %v84
    %v104 = vsel %vm94, %v90, 1326507024
    %v105 = vsel %vm93, %v87, %v104
    %v106 = vsel %vm92, %v103, %v105
    %v107 = vshll.u32 %v67, 8
    %v108 = vmul.u32.u64.compose %v107, %v106
    %v109 = vextract.low.u32 %v108
    %v110 = vextract.high.u32 %v108
    %v111 = vmul.u32.u64.compose %v107, %v102
    %v112 = vextract.low.u32 %v111
    %v113 = vextract.high.u32 %v111
    %v114 = vmul.u32 %v107, %v98
    %v115 = vadd.s32 %v110, %v112
    %vm116 = vc.u32 %v110, %v112
    %v117 = vadd.s32 %v113, 1
    %v118 = vsel %vm116, %v117, %v113
    %v119 = vadd.s32 %v114, %v118
    %v120 = vadd.s32 %v119, 536870912
    %v121 = vshrl.u32 %v120, 30
    %v122 = vshll.u32 %v121, 30
    %v123 = vsub.s32 %v119, %v122
    %vm124 = vcmp.lt.s32.totalorder %v123, 0
    %v125 = vsub.s32 0, %v123
    %v126 = vsel %vm124, %v125, %v123
    %v127 = vclz %v126
    %v128 = vsub.s32 %v127, 2
    %vm129 = vcmp.gt.s32.totalorder 0, %v128
    %v130 = vsel %vm129, 0, %v128
    %v131 = vsub.s32 32, %v130
    %v132 = vshll.u32 %v123, %v130
    %v133 = vshrl.u32 %v115, %v131
    %v134 = vor.u32 %v132, %v133
    %v135 = vsub.s32 4294967266, %v130
    %v136 = vadd.s32 %v135, 127
    %v137 = vshll.u32 %v136, 23
    %v138 = vor.u32 4788187, %v137
    %v139 = vand.u32 2147483647, %v138
    %v141 = vcvt.s32.f32 %v134
    %v142 = vmul.f32 %v141, %v139
    %v143 = vxor.u32 %v142, 2147483648
    %v144 = vsel %vm61, %v143, %v142
    %v145 = vsub.s32 4, %v121
    %v146 = vsel %vm61, %v145, %v121
    %v147 = vsel %vm60, %v58, %v144
    %v148 = vsel %vm60, 0, %v146
    %v149 = vcosq.f32.pop %v147
    %v150 = vsinq.f32.pop %v147
    %vm151 = vweird.f32 %v58
    %v152 = vadd.s32 %v148, 3
    %v153 = vand.u32 %v152, 3
    %vm154 = vcmp.lt.s32.totalorder %v153, 2
    %vm155 = vcmp.eq.s32.totalorder %v153, 0
    %v156 = vxor.u32 %v150, 2147483648
    %v157 = vsel %vm155, %v149, %v156
    %vm158 = vcmp.eq.s32.totalorder %v153, 2
    %v159 = vxor.u32 %v149, 2147483648
    %v160 = vsel %vm158, %v159, %v150
    %v161 = vsel %vm154, %v157, %v160
    %v162 = vsel %vm151, nan, %v161
    %v163 = vmul.f32 %v162, %v57
    %v164 = vand.u32 2147483647, %v58
    %vm165 = vcmp.le.f32.partialorder %v164, 0.7853982
    %vm166 = vcmp.lt.s32.totalorder %v58, 0
    %v167 = vand.u32 %v58, 2139095040
    %v168 = vshrl.u32 %v167, 23
    %v169 = vsub.s32 %v168, 127
    %v170 = vand.u32 2147483647, %v58
    %v171 = vand.u32 %v170, 8388607
    %v172 = vor.u32 %v171, 8388608
    %v173 = vsub.s32 0, %v172
    %v174 = vadd.s32 %v169, 1
    %vm175 = vcmp.gt.s32.totalorder %v174, 0
    %v176 = vsel %vm175, %v174, 0
    %v177 = vshrl.u32 %v176, 5
    %v178 = vand.u32 %v176, 31
    %v179 = vsub.s32 32, %v178
    %v180 = vshrl.u32 683565275, %v179
    %v181 = vshll.u32 683565275, %v178
    %v182 = vshrl.u32 2475754826, %v179
    %v183 = vor.u32 %v181, %v182
    %v184 = vshll.u32 2475754826, %v178
    %v185 = vshrl.u32 2131351028, %v179
    %v186 = vor.u32 %v184, %v185
    %v187 = vshll.u32 2131351028, %v178
    %v188 = vshrl.u32 2102212464, %v179
    %v189 = vor.u32 %v187, %v188
    %v190 = vshll.u32 2102212464, %v178
    %v191 = vshrl.u32 920167782, %v179
    %v192 = vor.u32 %v190, %v191
    %v193 = vshll.u32 920167782, %v178
    %v194 = vshrl.u32 1326507024, %v179
    %v195 = vor.u32 %v193, %v194
    %vm196 = vcmp.lt.s32.totalorder %v177, 1
    %vm197 = vcmp.lt.s32.totalorder %v177, 2
    %vm198 = vcmp.lt.s32.totalorder %v177, 3
    %vm199 = vcmp.lt.s32.totalorder %v177, 4
    %v200 = vsel %vm196, %v180, %v183
    %v201 = vsel %vm199, %v189, 2102212464
    %v202 = vsel %vm198, %v186, %v201
    %v203 = vsel %vm197, %v200, %v202
    %v204 = vsel %vm196, %v183, %v186
    %v205 = vsel %vm199, %v192, 920167782
    %v206 = vsel %vm198, %v189, %v205
    %v207 = vsel %vm197, %v204, %v206
    %v208 = vsel %vm196, %v186, %v189
    %v209 = vsel %vm199, %v195, 1326507024
    %v210 = vsel %vm198, %v192, %v209
    %v211 = vsel %vm197, %v208, %v210
    %v212 = vshll.u32 %v172, 8
    %v213 = vmul.u32.u64.compose %v212, %v211
    %v214 = vextract.low.u32 %v213
    %v215 = vextract.high.u32 %v213
    %v216 = vmul.u32.u64.compose %v212, %v207
    %v217 = vextract.low.u32 %v216
    %v218 = vextract.high.u32 %v216
    %v219 = vmul.u32 %v212, %v203
    %v220 = vadd.s32 %v215, %v217
    %vm221 = vc.u32 %v215, %v217
    %v222 = vadd.s32 %v218, 1
    %v223 = vsel %vm221, %v222, %v218
    %v224 = vadd.s32 %v219, %v223
    %v225 = vadd.s32 %v224, 536870912
    %v226 = vshrl.u32 %v225, 30
    %v227 = vshll.u32 %v226, 30
    %v228 = vsub.s32 %v224, %v227
    %vm229 = vcmp.lt.s32.totalorder %v228, 0
    %v230 = vsub.s32 0, %v228
    %v231 = vsel %vm229, %v230, %v228
    %v232 = vclz %v231
    %v233 = vsub.s32 %v232, 2
    %vm234 = vcmp.gt.s32.totalorder 0, %v233
    %v235 = vsel %vm234, 0, %v233
    %v236 = vsub.s32 32, %v235
    %v237 = vshll.u32 %v228, %v235
    %v238 = vshrl.u32 %v220, %v236
    %v239 = vor.u32 %v237, %v238
    %v240 = vsub.s32 4294967266, %v235
    %v241 = vadd.s32 %v240, 127
    %v242 = vshll.u32 %v241, 23
    %v243 = vor.u32 4788187, %v242
    %v244 = vand.u32 2147483647, %v243
    %v246 = vcvt.s32.f32 %v239
    %v247 = vmul.f32 %v246, %v244
    %v248 = vxor.u32 %v247, 2147483648
    %v249 = vsel %vm166, %v248, %v247
    %v250 = vsub.s32 4, %v226
    %v251 = vsel %vm166, %v250, %v226
    %v252 = vsel %vm165, %v58, %v249
    %v253 = vsel %vm165, 0, %v251
    %v254 = vcosq.f32.pop %v252
    %v255 = vsinq.f32.pop %v252
    %vm256 = vweird.f32 %v58
    %v257 = vand.u32 %v253, 3
    %vm258 = vcmp.lt.s32.totalorder %v257, 2
    %vm259 = vcmp.eq.s32.totalorder %v257, 0
    %v260 = vxor.u32 %v255, 2147483648
    %v261 = vsel %vm259, %v254, %v260
    %vm262 = vcmp.eq.s32.totalorder %v257, 2
    %v263 = vxor.u32 %v254, 2147483648
    %v264 = vsel %vm262, %v263, %v255
    %v265 = vsel %vm258, %v261, %v264
    %v266 = vsel %vm256, nan, %v265
    %v267 = vsub.f32 1.0, %v266
    %v268 = vmul.f32 %v57, %v57
    %v269 = vmul.f32 %v267, %v268
    %v270 = vmul.f32 %v163, %v40
    %v271 = vmul.f32 %v163, %v42
    %v272 = vmul.f32 %v163, %v44
    %v273 = vmul.f32 %v40, %v42
    %v274 = vmul.f32 %v269, %v273
    %v275 = vmul.f32 %v40, %v44
    %v276 = vmul.f32 %v269, %v275
    %v277 = vmul.f32 %v42, %v44
    %v278 = vmul.f32 %v269, %v277
    %v279 = vadd.f32 %v52, %v53
    %v280 = vmul.f32 %v269, %v279
    %v281 = vsub.f32 1.0, %v280
    %v282 = vsub.f32 %v274, %v272
    %v283 = vadd.f32 %v276, %v271
    %v284 = vadd.f32 %v274, %v272
    %v285 = vadd.f32 %v51, %v53
    %v286 = vmul.f32 %v269, %v285
    %v287 = vsub.f32 1.0, %v286
    %v288 = vsub.f32 %v278, %v270
    %v289 = vsub.f32 %v276, %v271
    %v290 = vadd.f32 %v278, %v270
    %v291 = vmul.f32 %v269, %v54
    %v292 = vsub.f32 1.0, %v291
    %v293 = vld [vmem:[#allocation5] sm:$0xff]
    %s294 = scalar_lea.vmem [#allocation5], 32
    %v295 = vld [vmem:[%s294] sm:$0xff]
    %s296 = scalar_lea.vmem [#allocation5], 64
    %v297 = vld [vmem:[%s296] sm:$0xff]
    %s298 = scalar_lea.vmem [#allocation5], 96
    %v299 = vld [vmem:[%s298] sm:$0xff]
    %v300 = vmul.f32 %v281, %v293
    %v301 = vmul.f32 %v282, %v295
    %v302 = vadd.f32 %v300, %v301
    %v303 = vmul.f32 %v283, %v297
    %v304 = vadd.f32 %v302, %v303
    %v305 = vmul.f32 %v46, %v299
    %v306 = vadd.f32 %v304, %v305
    %307 = vst [vmem:[#allocation7] sm:$0xff] %v306
    %v308 = vmul.f32 %v284, %v293
    %v309 = vmul.f32 %v287, %v295
    %v310 = vadd.f32 %v308, %v309
    %v311 = vmul.f32 %v288, %v297
    %v312 = vadd.f32 %v310, %v311
    %v313 = vmul.f32 %v48, %v299
    %v314 = vadd.f32 %v312, %v313
    %s315 = scalar_lea.vmem [#allocation7], 32
    %316 = vst [vmem:[%s315] sm:$0xff] %v314
    %v317 = vmul.f32 %v289, %v293
    %v318 = vmul.f32 %v290, %v295
    %v319 = vadd.f32 %v317, %v318
    %v320 = vmul.f32 %v292, %v297
    %v321 = vadd.f32 %v319, %v320
    %v322 = vmul.f32 %v50, %v299
    %v323 = vadd.f32 %v321, %v322
    %s324 = scalar_lea.vmem [#allocation7], 64
    %325 = vst [vmem:[%s324] sm:$0xff] %v323
    %s326 = scalar_lea.vmem [#allocation7], 96
    %327 = vst [vmem:[%s326] sm:$0xff] %v299
    %s328 = scalar_lea.vmem [#allocation5], 8
    %v329 = vld [vmem:[%s328] sm:$0xff]
    %s330 = scalar_lea.vmem [#allocation5], 40
    %v331 = vld [vmem:[%s330] sm:$0xff]
    %s332 = scalar_lea.vmem [#allocation5], 72
    %v333 = vld [vmem:[%s332] sm:$0xff]
    %s334 = scalar_lea.vmem [#allocation5], 104
    %v335 = vld [vmem:[%s334] sm:$0xff]
    %v336 = vmul.f32 %v281, %v329
    %v337 = vmul.f32 %v282, %v331
    %v338 = vadd.f32 %v336, %v337
    %v339 = vmul.f32 %v283, %v333
    %v340 = vadd.f32 %v338, %v339
    %v341 = vmul.f32 %v46, %v335
    %v342 = vadd.f32 %v340, %v341
    %s343 = scalar_lea.vmem [#allocation7], 8
    %344 = vst [vmem:[%s343] sm:$0xff] %v342
    %v345 = vmul.f32 %v284, %v329
    %v346 = vmul.f32 %v287, %v331
    %v347 = vadd.f32 %v345, %v346
    %v348 = vmul.f32 %v288, %v333
    %v349 = vadd.f32 %v347, %v348
    %v350 = vmul.f32 %v48, %v335
    %v351 = vadd.f32 %v349, %v350
    %s352 = scalar_lea.vmem [#allocation7], 40
    %353 = vst [vmem:[%s352] sm:$0xff] %v351
    %v354 = vmul.f32 %v289, %v329
    %v355 = vmul.f32 %v290, %v331
    %v356 = vadd.f32 %v354, %v355
    %v357 = vmul.f32 %v292, %v333
    %v358 = vadd.f32 %v356, %v357
    %v359 = vmul.f32 %v50, %v335
    %v360 = vadd.f32 %v358, %v359
    %s361 = scalar_lea.vmem [#allocation7], 72
    %362 = vst [vmem:[%s361] sm:$0xff] %v360
    %s363 = scalar_lea.vmem [#allocation7], 104
    %364 = vst [vmem:[%s363] sm:$0xff] %v335
    %s365 = scalar_lea.vmem [#allocation5], 16
    %v366 = vld [vmem:[%s365] sm:$0xff]
    %s367 = scalar_lea.vmem [#allocation5], 48
    %v368 = vld [vmem:[%s367] sm:$0xff]
    %s369 = scalar_lea.vmem [#allocation5], 80
    %v370 = vld [vmem:[%s369] sm:$0xff]
    %s371 = scalar_lea.vmem [#allocation5], 112
    %v372 = vld [vmem:[%s371] sm:$0xff]
    %v373 = vmul.f32 %v281, %v366
    %v374 = vmul.f32 %v282, %v368
    %v375 = vadd.f32 %v373, %v374
    %v376 = vmul.f32 %v283, %v370
    %v377 = vadd.f32 %v375, %v376
    %v378 = vmul.f32 %v46, %v372
    %v379 = vadd.f32 %v377, %v378
    %s380 = scalar_lea.vmem [#allocation7], 16
    %381 = vst [vmem:[%s380] sm:$0xff] %v379
    %v382 = vmul.f32 %v284, %v366
    %v383 = vmul.f32 %v287, %v368
    %v384 = vadd.f32 %v382, %v383
    %v385 = vmul.f32 %v288, %v370
    %v386 = vadd.f32 %v384, %v385
    %v387 = vmul.f32 %v48, %v372
    %v388 = vadd.f32 %v386, %v387
    %s389 = scalar_lea.vmem [#allocation7], 48
    %390 = vst [vmem:[%s389] sm:$0xff] %v388
    %v391 = vmul.f32 %v289, %v366
    %v392 = vmul.f32 %v290, %v368
    %v393 = vadd.f32 %v391, %v392
    %v394 = vmul.f32 %v292, %v370
    %v395 = vadd.f32 %v393, %v394
    %v396 = vmul.f32 %v50, %v372
    %v397 = vadd.f32 %v395, %v396
    %s398 = scalar_lea.vmem [#allocation7], 80
    %399 = vst [vmem:[%s398] sm:$0xff] %v397
    %s400 = scalar_lea.vmem [#allocation7], 112
    %401 = vst [vmem:[%s400] sm:$0xff] %v372
    %s402 = scalar_lea.vmem [#allocation5], 24
    %v403 = vld [vmem:[%s402] sm:$0xff]
    %s404 = scalar_lea.vmem [#allocation5], 56
    %v405 = vld [vmem:[%s404] sm:$0xff]
    %s406 = scalar_lea.vmem [#allocation5], 88
    %v407 = vld [vmem:[%s406] sm:$0xff]
    %s408 = scalar_lea.vmem [#allocation5], 120
    %v409 = vld [vmem:[%s408] sm:$0xff]
    %v410 = vmul.f32 %v281, %v403
    %v411 = vmul.f32 %v282, %v405
    %v412 = vadd.f32 %v410, %v411
    %v413 = vmul.f32 %v283, %v407
    %v414 = vadd.f32 %v412, %v413
    %v415 = vmul.f32 %v46, %v409
    %v416 = vadd.f32 %v414, %v415
    %s417 = scalar_lea.vmem [#allocation7], 24
    %418 = vst [vmem:[%s417] sm:$0xff] %v416
    %v419 = vmul.f32 %v284, %v403
    %v420 = vmul.f32 %v287, %v405
    %v421 = vadd.f32 %v419, %v420
    %v422 = vmul.f32 %v288, %v407
    %v423 = vadd.f32 %v421, %v422
    %v424 = vmul.f32 %v48, %v409
    %v425 = vadd.f32 %v423, %v424
    %s426 = scalar_lea.vmem [#allocation7], 56
    %427 = vst [vmem:[%s426] sm:$0xff] %v425
    %v428 = vmul.f32 %v289, %v403
    %v429 = vmul.f32 %v290, %v405
    %v430 = vadd.f32 %v428, %v429
    %v431 = vmul.f32 %v292, %v407
    %v432 = vadd.f32 %v430, %v431
    %v433 = vmul.f32 %v50, %v409
    %v434 = vadd.f32 %v432, %v433
    %s435 = scalar_lea.vmem [#allocation7], 88
    %436 = vst [vmem:[%s435] sm:$0xff] %v434
    %s437 = scalar_lea.vmem [#allocation7], 120
    %438 = vst [vmem:[%s437] sm:$0xff] %v409
    // Predicated region
    $region18: #{tpu_custom_call.1} parent=1 // pred_check
      _
    $region19: #{tpu_custom_call.1} parent=1 // pred_check_branch
      %440 = sbr.rel (0) target = $region21
    $region20: #{tpu_custom_call.1} parent=1 // pred_region
      %s442 = ssub.s32 2048, 2048
      %443 = vsyncadd [#allocation4], %s442
      %s444 = sshll.u32 [#allocation7], 4
      %s445 = int_to_ptr.vmem [resolvable:$true] %s444
      %450 = dma.vmem_to_hbm [thread:$0]  %s445, 2048, %s2, [#allocation4], 128, 128, 8
    $region21: #{tpu_custom_call.1} parent=1 // pred_fallthru
      _
    // Predicated region
    $region22: #{tpu_custom_call.1} parent=1 // pred_check
      _
    $region23: #{tpu_custom_call.1} parent=1 // pred_check_branch
      %452 = sbr.rel (0) target = $region25
    $region24: #{tpu_custom_call.1} parent=1 // pred_region
      %453 = dma.done [#allocation4], 2048
    $region25: #{tpu_custom_call.1} parent=1 // pred_fallthru
      _
    %454 = vsyncpa [#allocation3], 1
    %455 = vsyncpa [#allocation6], 1
    %456 = vsyncpa [#allocation4], 1

</llo_original>
